<compile_context>
chip_gen: v7x
topology: tpu7x:2x2x1
jax: 0.10.0
libtpu: 0.0.40
codegen_flags: <defaults>
</compile_context>

<pallas_src>
import functools

import jax
import jax.numpy as jnp
from jax.experimental import pallas as pl
from jax.experimental.pallas import tpu as pltpu

_IO_DTYPE = jnp.bfloat16   # streamed patches + resident weights (f32 accumulate)
_TM_TARGET = 16 * 1024     # per-step lane tile (perf review: 8192 - 32768)


def _round_up(a, b):
    return (a + b - 1) // b * b


def _choose_tile(hwo, n_batch):
    """Pick (tm, hwo_pad): tm a 128-multiple that divides hwo_pad, tm <= target,
    preferring zero extra padding; keep >= 2 total grid steps when possible so
    the parallel grid axes can shard across v7x's two TensorCores."""
    hwo128 = _round_up(max(hwo, 1), 128)
    q = hwo128 // 128                        # size in units of 128 lanes
    want_tiles = 1 if n_batch >= 2 else 2    # batch axis already gives >= 2 steps
    tiles = want_tiles if q >= want_tiles else 1
    dmax = max(1, min(_TM_TARGET // 128, q // tiles))
    d = 1
    for cand in range(dmax, 0, -1):          # largest divisor -> no extra pad
        if q % cand == 0:
            d = cand
            break
    if d * 8 < dmax:                         # divisor pathologically small:
        d = dmax                             # pad a bit, don't eat step overhead
    tm = d * 128
    return tm, _round_up(hwo128, tm)


def _conv_mm_kernel(p_ref, w_ref, b_ref, o_ref):
    # p_ref: (1, K, tm)      bf16 patch columns (streamed, lane-dense)
    # w_ref: (n_feat, K)     bf16 weights (resident)
    # b_ref: (n_feat, 1)     f32 bias (resident)
    # o_ref: (1, n_feat, tm) output (lane-dense, batch-major)
    acc = jnp.dot(w_ref[...], p_ref[0], preferred_element_type=jnp.float32)
    acc = acc + b_ref[...]                           # broadcast over lanes
    o_ref[0] = jnp.maximum(acc, 0.0).astype(o_ref.dtype)


@functools.partial(jax.jit, static_argnames=("out_dtype",))
def compress_unit_forward(x, weight, bias, out_dtype=jnp.float32):
    """x: (N, 8, H, W) f32 NCHW (like PyTorch).
    weight: (n_feat, 8, 2, 2), bias: (n_feat,).
    Returns (N, n_feat, H//2, W//2), matching Conv2d(8, n_feat, 2, 2) + ReLU."""
    N, C, H, W = x.shape
    n_feat = weight.shape[0]
    # PyTorch Conv2d(k=2, s=2): floor division; trailing odd row/col dropped.
    Ho, Wo = H // 2, W // 2
    K = C * 2 * 2
    HWo = Ho * Wo

    # ---- space-to-depth, batch-major: pT[n, (c,kh,kw), (ho,wo)], K flattened
    # in (c, kh, kw) order to match PyTorch's weight.reshape(n_feat, -1).
    x_c = x[:, :, : 2 * Ho, : 2 * Wo]
    pT = (
        x_c.reshape(N, C, Ho, 2, Wo, 2)
        .transpose(0, 1, 3, 5, 2, 4)                 # (N, C, kh, kw, Ho, Wo)
        .reshape(N, K, HWo)
        .astype(_IO_DTYPE)
    )
    w_mat = weight.reshape(n_feat, K).astype(_IO_DTYPE)
    b_col = bias.reshape(n_feat, 1).astype(jnp.float32)

    tm, HWo_pad = _choose_tile(HWo, N)
    if HWo_pad != HWo:
        # Usually a no-op (tm picked as a divisor of the 128-rounded size);
        # otherwise a small pad whose junk columns are sliced off below and
        # never reduced over.
        pT = jnp.pad(pT, ((0, 0), (0, 0), (0, HWo_pad - HWo)))
    grid = (N, HWo_pad // tm)

    out_bytes = jnp.dtype(out_dtype).itemsize
    cost = pl.CostEstimate(
        flops=2 * n_feat * K * N * HWo_pad,
        transcendentals=0,
        bytes_accessed=(N * K * HWo_pad * 2              # streamed patches (bf16)
                        + n_feat * K * 2 + n_feat * 4    # resident weights / bias
                        + N * n_feat * HWo_pad * out_bytes),
    )

    out_pad = pl.pallas_call(
        _conv_mm_kernel,
        out_shape=jax.ShapeDtypeStruct((N, n_feat, HWo_pad), out_dtype),
        grid=grid,
        in_specs=[
            pl.BlockSpec((1, K, tm), lambda n, i: (n, 0, i)),     # streamed patches
            pl.BlockSpec((n_feat, K), lambda n, i: (0, 0)),       # resident weights
            pl.BlockSpec((n_feat, 1), lambda n, i: (0, 0)),       # resident bias
        ],
        out_specs=pl.BlockSpec((1, n_feat, tm), lambda n, i: (n, 0, i)),
        compiler_params=pltpu.CompilerParams(
            dimension_semantics=("parallel", "parallel"),
            # Let XLA fuse the space-to-depth transpose / bf16 cast / pad into
            # the pallas_call input DMA instead of materializing im2col in HBM.
            allow_input_fusion=[True, True, True],
        ),
        cost_estimate=cost,
    )(pT, w_mat, b_col)

    # Output is already batch-major: only a free reshape (plus a cheap last-dim
    # slice when HWo was padded) — no transpose pass over the output.
    out = out_pad[:, :, :HWo] if HWo_pad != HWo else out_pad
    return out.reshape(N, n_feat, Ho, Wo)


def _torch_ref(x_, w_, b_):
    r = jax.lax.conv_general_dilated(
        x_, w_, window_strides=(2, 2), padding="VALID",
        dimension_numbers=("NCHW", "OIHW", "NCHW"),
    ) + b_.reshape(1, -1, 1, 1)
    return jnp.maximum(r, 0.0)


if __name__ == "__main__":
    key = jax.random.PRNGKey(0)
    k_x, k_w, k_b = jax.random.split(key, 3)

    n_feat = 16
    N, C, H, W = 2, 8, 16, 16

    x = jax.random.normal(k_x, (N, C, H, W), dtype=jnp.float32)
    # Synthetic parameters with nn.Conv2d(8, n_feat, 2, 2) shapes.
    weight = jax.random.normal(k_w, (n_feat, C, 2, 2), dtype=jnp.float32) * 0.1
    bias = jax.random.normal(k_b, (n_feat,), dtype=jnp.float32) * 0.1

    out = jax.block_until_ready(compress_unit_forward(x, weight, bias))
    assert out.shape == (N, n_feat, H // 2, W // 2)
    assert out.dtype == jnp.float32

    # Tight check: reference fed the same bf16-rounded inputs the kernel reads
    # (both accumulate in f32, so they agree modulo summation order).
    ref_tight = _torch_ref(
        x.astype(jnp.bfloat16).astype(jnp.float32),
        weight.astype(jnp.bfloat16).astype(jnp.float32),
        bias,
    )
    assert jnp.allclose(out, ref_tight, atol=1e-4, rtol=1e-4)

    # Against the full-f32 PyTorch-equivalent reference (bf16 I/O tolerance).
    ref_f32 = _torch_ref(x, weight, bias)
    assert jnp.allclose(out, ref_f32, atol=5e-2, rtol=5e-2)

    # bf16-output fast path (perf-review item): same values modulo bf16 rounding.
    out_bf16 = jax.block_until_ready(
        compress_unit_forward(x, weight, bias, out_dtype=jnp.bfloat16))
    assert out_bf16.dtype == jnp.bfloat16
    assert jnp.allclose(out_bf16.astype(jnp.float32), ref_tight,
                        atol=5e-2, rtol=5e-2)

    # Odd spatial size: PyTorch drops the trailing row/column; also exercises
    # the 128-lane padding tail path.
    x_odd = jax.random.normal(k_x, (N, C, 9, 9), dtype=jnp.float32)
    out_odd = jax.block_until_ready(compress_unit_forward(x_odd, weight, bias))
    ref_odd = _torch_ref(
        x_odd.astype(jnp.bfloat16).astype(jnp.float32),
        weight.astype(jnp.bfloat16).astype(jnp.float32),
        bias,
    )
    assert out_odd.shape == (N, n_feat, 4, 4)
    assert jnp.allclose(out_odd, ref_odd, atol=1e-4, rtol=1e-4)

    print("KERNEL_OK")
</pallas_src>

<mosaic_0001>
module attributes {stable_mosaic.version = 11 : i64} {
  func.func @_conv_mm_kernel(%arg0: i32, %arg1: i32, %arg2: memref<1x32x128xbf16, #tpu.memory_space<vmem>>, %arg3: memref<16x32xbf16, #tpu.memory_space<vmem>>, %arg4: memref<16x1xf32, #tpu.memory_space<vmem>>, %arg5: memref<1x16x128xf32, #tpu.memory_space<vmem>>) attributes {dimension_semantics = [#tpu.dimension_semantics<parallel>, #tpu.dimension_semantics<parallel>], iteration_bounds = array<i64: 2, 1>, scalar_prefetch = 0 : i64, scratch_operands = 0 : i64, tpu.core_type = #tpu.core_type<tc>, window_params = [{transform_indices = @transform_0, window_bounds = array<i64: 1, 32, 128>}, {pipeline_mode = #tpu.pipeline_mode<synchronous>, transform_indices = @transform_1, window_bounds = array<i64: 16, 32>}, {pipeline_mode = #tpu.pipeline_mode<synchronous>, transform_indices = @transform_2, window_bounds = array<i64: 16, 1>}, {transform_indices = @transform_3, window_bounds = array<i64: 1, 16, 128>}]} {
    %c0 = arith.constant 0 : index
    %c0_0 = arith.constant 0 : index
    %0 = vector.load %arg3[%c0, %c0_0] : memref<16x32xbf16, #tpu.memory_space<vmem>>, vector<16x32xbf16>
    %c0_1 = arith.constant 0 : index
    %c0_2 = arith.constant 0 : index
    %c0_3 = arith.constant 0 : index
    %1 = vector.load %arg2[%c0_1, %c0_2, %c0_3] : memref<1x32x128xbf16, #tpu.memory_space<vmem>>, vector<1x32x128xbf16>
    %2 = vector.shape_cast %1 : vector<1x32x128xbf16> to vector<32x128xbf16>
    %cst = arith.constant dense<0.000000e+00> : vector<16x128xf32>
    %3 = tpu.matmul %0, %2, %cst {dimension_numbers = #tpu.dot_dimension_numbers<[1], [0], [0], [1], [0, 0, 1, 1], [], []>} : vector<16x32xbf16>, vector<32x128xbf16>, vector<16x128xf32> -> vector<16x128xf32>
    %c0_4 = arith.constant 0 : index
    %c0_5 = arith.constant 0 : index
    %4 = vector.load %arg4[%c0_4, %c0_5] : memref<16x1xf32, #tpu.memory_space<vmem>>, vector<16x1xf32>
    %5 = vector.broadcast %4 : vector<16x1xf32> to vector<16x128xf32>
    %6 = arith.addf %3, %5 : vector<16x128xf32>
    %cst_6 = arith.constant 0.000000e+00 : f32
    %7 = vector.broadcast %cst_6 : f32 to vector<16x128xf32>
    %8 = arith.maximumf %6, %7 : vector<16x128xf32>
    %c0_7 = arith.constant 0 : index
    %c0_8 = arith.constant 0 : index
    %c0_9 = arith.constant 0 : index
    %9 = vector.load %arg5[%c0_7, %c0_8, %c0_9] : memref<1x16x128xf32, #tpu.memory_space<vmem>>, vector<1x16x128xf32>
    %10 = vector.shape_cast %9 : vector<1x16x128xf32> to vector<16x128xf32>
    %11 = vector.shape_cast %8 : vector<16x128xf32> to vector<1x16x128xf32>
    tpu.vector_store %arg5[%c0_7, %c0_8, %c0_9], %11 {strides = array<i32>} : memref<1x16x128xf32, #tpu.memory_space<vmem>>, vector<1x16x128xf32>,
    return
  }
  func.func @transform_0(%arg0: i32, %arg1: i32) -> (i32, i32, i32) {
    %c0_i32 = arith.constant 0 : i32
    %c0_i32_0 = arith.constant 0 : i32
    return %arg0, %c0_i32, %arg1 : i32, i32, i32
  }
  func.func @transform_1(%arg0: i32, %arg1: i32) -> (i32, i32) {
    %c0_i32 = arith.constant 0 : i32
    %c0_i32_0 = arith.constant 0 : i32
    %c0_i32_1 = arith.constant 0 : i32
    return %c0_i32, %c0_i32_0 : i32, i32
  }
  func.func @transform_2(%arg0: i32, %arg1: i32) -> (i32, i32) {
    %c0_i32 = arith.constant 0 : i32
    %c0_i32_0 = arith.constant 0 : i32
    %c0_i32_1 = arith.constant 0 : i32
    return %c0_i32, %c0_i32_0 : i32, i32
  }
  func.func @transform_3(%arg0: i32, %arg1: i32) -> (i32, i32, i32) {
    %c0_i32 = arith.constant 0 : i32
    %c0_i32_0 = arith.constant 0 : i32
    return %arg0, %c0_i32, %arg1 : i32, i32, i32
  }
}

</mosaic_0001>

<llo_original>
// kernel: compress_unit_forward.2
$region0: #{compress_unit_forward.2}
  #allocation0 [shape = 'u32[]', space=smem, size = 0x4, offset = 0x4, fixed_abs, tag = 'smem constant byte address 0x4 - core index']
  #allocation1 [shape = 'u32[144,128]{1,0:T(1,128)}', space=vmem, size = 0x12000, scoped, tag = 'internal scratch']
  #allocation2 [shape = 'u32[2048]{0}', space=vmem, size = 0x2000, scoped, tag = 'scoped memory for compress_unit_forward.2']
  #allocation3 [shape = 'u32[2048]{0}', space=vmem, size = 0x2000, scoped, tag = 'scoped memory for compress_unit_forward.2']
  #allocation4 [shape = 'u32[2048]{0}', space=vmem, size = 0x2000, scoped, tag = 'scoped memory for compress_unit_forward.2']
  #allocation5 [shape = 'u32[2048]{0}', space=vmem, size = 0x2000, scoped, tag = 'scoped memory for compress_unit_forward.2']
  #allocation6 [shape = 'u32[2048]{0}', space=vmem, size = 0x2000, scoped, tag = 'scoped memory for compress_unit_forward.2']
  %s0 = inlined_call_operand.vmem [shape: bf16[16,32], index: 0, kind: input, shape index: {}]
  %s1 = inlined_call_operand.vmem [shape: f32[16,1], index: 1, kind: input, shape index: {}]
  %s2 = inlined_call_operand.vmem [shape: bf16[2,32,64], index: 2, kind: input, shape index: {}]
  %s3 = inlined_call_operand.<no memory space> [shape: bf16[], index: 3, kind: input, shape index: {}]
  %s4 = inlined_call_operand.vmem [shape: f32[2,16,128], index: 4, kind: output, shape index: {}]
  %s5 = sld [smem:[#allocation0]]
  $region45: #{compress_unit_forward.2} parent=0
    _
  %s7 = ssub.s32 1, %s5
  %s8 = scalar_select 0, %s7, %s5
  %v9 = vstv %s3
  %v10 = vunpack.i.l.bf16 %v9
  %v12 = vunpack.i.h.bf16 %v9
  loop: start=0, step=1, limit=4
  $region2: #{compress_unit_forward.2} parent=0 // loop_pre_header
    _
  $region3: #{compress_unit_forward.2} parent=0 // loop_header
    %s15 = sphi 0, %s19
    %p16 = scmp.ge.s32.totalorder %s15, 4
    %s22 = sphi 0, %s34
    %s23 = sphi 0, %s30
    %s24 = sphi 0, %s22
    %s25 = sphi 0, %s23
    %s26 = sphi 0, %s24
    %s27 = sphi 0, %s25
    %s39 = sphi 0, %s41
    %s42 = sphi 0, %s39
    %s43 = sphi 0, %s42
    %s59 = sphi 0, %s43
    %s63 = sphi 0, %s63
    %s65 = sphi 0, %s63
    %s66 = sphi 0, %s65
    %s80 = sphi 0, %s66
    %s84 = sphi 0, %s84
    %s86 = sphi 0, %s84
    %s87 = sphi 0, %s86
    %s101 = sphi 0, %s87
    %s109 = sphi 0, %s111
    %s112 = sphi 0, %s109
    %s113 = sphi 0, %s112
    %s129 = sphi 0, %s113
  $region4: #{compress_unit_forward.2} parent=0 // loop_header_branch
    %18 = sbr.rel (%p16) target = $region8
  $region5: #{compress_unit_forward.2} parent=0 // loop_body
    %s20 = ssub.s32 %s15, 1
    %s21 = ssub.s32 %s15, 2
    %s28 = sadd.s32 1, %s23
    %p29 = scmp.ge.s32.totalorder %s28, 1
    %s30 = scalar_select %p29, 0, %s28
    %s31 = sadd.s32 1, %s22
    %s32 = scalar_select %p29, %s31, %s22
    %p33 = scmp.ge.s32.totalorder %s32, 2
    %s34 = scalar_select %p33, 0, %s32
    %s35 = ssub.s32 %s22, %s34
    %s36 = ssub.s32 %s23, %s30
    %s37 = sor.u32 %s35, %s36
    %p38 = scmp.eq.s32.totalorder %s37, 0
    %s40 = sadd.s32 %s39, 1
    %s41 = scalar_select %p38, %s39, %s40
    %p44 = pneg %p38
    %p45 = scmp.eq.s32.totalorder %s15, 1
    %p46 = por %p44, %p45
    %p47 = scmp.ne.s32.totalorder %s39, %s42
    %p48 = scmp.eq.s32.totalorder %s15, 0
    %p49 = por %p47, %p48
    %p50 = scmp.ne.s32.totalorder %s39, %s42
    %p51 = scmp.eq.s32.totalorder %s20, 1
    %p52 = por %p50, %p51
    %p53 = scmp.ne.s32.totalorder %s42, %s43
    %p54 = scmp.eq.s32.totalorder %s20, 0
    %p55 = por %p53, %p54
    %p56 = scmp.ne.s32.totalorder %s42, %s43
    %p57 = scmp.eq.s32.totalorder %s21, 1
    %p58 = por %p56, %p57
    %p60 = scmp.ne.s32.totalorder %s43, %s59
    %p61 = scmp.eq.s32.totalorder %s21, 0
    %p62 = por %p60, %p61
    %s64 = sadd.s32 %s63, 1
    %p67 = scmp.eq.s32.totalorder %s15, 1
    %p68 = scmp.ne.s32.totalorder %s63, %s65
    %p69 = scmp.eq.s32.totalorder %s15, 0
    %p70 = por %p68, %p69
    %p71 = scmp.ne.s32.totalorder %s63, %s65
    %p72 = scmp.eq.s32.totalorder %s20, 1
    %p73 = por %p71, %p72
    %p74 = scmp.ne.s32.totalorder %s65, %s66
    %p75 = scmp.eq.s32.totalorder %s20, 0
    %p76 = por %p74, %p75
    %p77 = scmp.ne.s32.totalorder %s65, %s66
    %p78 = scmp.eq.s32.totalorder %s21, 1
    %p79 = por %p77, %p78
    %p81 = scmp.ne.s32.totalorder %s66, %s80
    %p82 = scmp.eq.s32.totalorder %s21, 0
    %p83 = por %p81, %p82
    %s85 = sadd.s32 %s84, 1
    %p88 = scmp.eq.s32.totalorder %s15, 1
    %p89 = scmp.ne.s32.totalorder %s84, %s86
    %p90 = scmp.eq.s32.totalorder %s15, 0
    %p91 = por %p89, %p90
    %p92 = scmp.ne.s32.totalorder %s84, %s86
    %p93 = scmp.eq.s32.totalorder %s20, 1
    %p94 = por %p92, %p93
    %p95 = scmp.ne.s32.totalorder %s86, %s87
    %p96 = scmp.eq.s32.totalorder %s20, 0
    %p97 = por %p95, %p96
    %p98 = scmp.ne.s32.totalorder %s86, %s87
    %p99 = scmp.eq.s32.totalorder %s21, 1
    %p100 = por %p98, %p99
    %p102 = scmp.ne.s32.totalorder %s87, %s101
    %p103 = scmp.eq.s32.totalorder %s21, 0
    %p104 = por %p102, %p103
    %s105 = ssub.s32 %s22, %s34
    %s106 = ssub.s32 %s23, %s30
    %s107 = sor.u32 %s105, %s106
    %p108 = scmp.eq.s32.totalorder %s107, 0
    %s110 = sadd.s32 %s109, 1
    %s111 = scalar_select %p108, %s109, %s110
    %p114 = pneg %p108
    %p115 = scmp.eq.s32.totalorder %s15, 1
    %p116 = por %p114, %p115
    %p117 = scmp.ne.s32.totalorder %s109, %s112
    %p118 = scmp.eq.s32.totalorder %s15, 0
    %p119 = por %p117, %p118
    %p120 = scmp.ne.s32.totalorder %s109, %s112
    %p121 = scmp.eq.s32.totalorder %s20, 1
    %p122 = por %p120, %p121
    %p123 = scmp.ne.s32.totalorder %s112, %s113
    %p124 = scmp.eq.s32.totalorder %s20, 0
    %p125 = por %p123, %p124
    %p126 = scmp.ne.s32.totalorder %s112, %s113
    %p127 = scmp.eq.s32.totalorder %s21, 1
    %p128 = por %p126, %p127
    %p130 = scmp.ne.s32.totalorder %s113, %s129
    %p131 = scmp.eq.s32.totalorder %s21, 0
    %p132 = por %p130, %p131
    %p133 = scmp.le.s32.totalorder 1, %s15
    %p134 = scmp.lt.s32.totalorder %s15, 3
    %p135 = pnand %p133, %p134
    %p136 = pneg %p135
    // Predicated region
    $region9: #{compress_unit_forward.2} parent=5 // pred_check
      _
    $region10: #{compress_unit_forward.2} parent=5 // pred_check_branch
      %138 = sbr.rel (%p135) target = $region12
    $region11: #{compress_unit_forward.2} parent=5 // pred_region
      %s139 = ssub.s32 %s15, 1
      // Predicated region
      $region13: #{compress_unit_forward.2} parent=11 // pred_check
        %p140 = pneg %p76
      $region14: #{compress_unit_forward.2} parent=11 // pred_check_branch
        %142 = sbr.rel (%p140) target = $region16
      $region15: #{compress_unit_forward.2} parent=11 // pred_region
        _
      $region16: #{compress_unit_forward.2} parent=11 // pred_fallthru
        _
      // Predicated region
      $region17: #{compress_unit_forward.2} parent=11 // pred_check
        %p143 = pneg %p97
      $region18: #{compress_unit_forward.2} parent=11 // pred_check_branch
        %145 = sbr.rel (%p143) target = $region20
      $region19: #{compress_unit_forward.2} parent=11 // pred_region
        _
      $region20: #{compress_unit_forward.2} parent=11 // pred_fallthru
        _
    $region12: #{compress_unit_forward.2} parent=5 // pred_fallthru
      _
    %p146 = scmp.lt.s32.totalorder %s15, 2
    // Predicated region
    $region21: #{compress_unit_forward.2} parent=5 // pred_check
      %p147 = pneg %p146
    $region22: #{compress_unit_forward.2} parent=5 // pred_check_branch
      %149 = sbr.rel (%p147) target = $region24
    $region23: #{compress_unit_forward.2} parent=5 // pred_region
      // Predicated region
      $region25: #{compress_unit_forward.2} parent=23 // pred_check
        %p150 = pneg %p49
      $region26: #{compress_unit_forward.2} parent=23 // pred_check_branch
        %152 = sbr.rel (%p150) target = $region28
      $region27: #{compress_unit_forward.2} parent=23 // pred_region
        %s153 = ssub.s32 1, %s23
        %s154 = smul.u32 256, %s153
        %p155 = scmp.lt.s32.totalorder %s22, 1
        %s156 = scalar_select %p155, %s22, 1
        %p157 = scmp.lt.s32.totalorder %s23, 0
        %s158 = scalar_select %p157, %s23, 0
        %s159 = smul.addr %s156, 4
        %s160 = sadd.s32 %s158, %s159
        %s161 = smul.addr %s160, 4
        %s162 = scalar_lea.vmem %s2, %s161
        %s163 = ssub.s32 1, %s23
        %s164 = smul.u32 256, %s163
      $region28: #{compress_unit_forward.2} parent=23 // pred_fallthru
        _
    $region24: #{compress_unit_forward.2} parent=5 // pred_fallthru
      _
    %p165 = scmp.le.s32.totalorder 1, %s15
    %p166 = scmp.lt.s32.totalorder %s15, 3
    %p167 = pnand %p165, %p166
    %p168 = pneg %p167
    // Predicated region
    $region29: #{compress_unit_forward.2} parent=5 // pred_check
      _
    $region30: #{compress_unit_forward.2} parent=5 // pred_check_branch
      %170 = sbr.rel (%p167) target = $region32
    $region31: #{compress_unit_forward.2} parent=5 // pred_region
      #allocation7 [shape = 'u8[8192]{0}', space=vmem, size = 0x2000, dematerialized = true, scoped, tag = 'FusionAdapter Buffer %fusion.1 = bf16[2,32,128]{2,1,0:T(8,128)(2,1)} fusion(%param_2.1, %param_3), kind=kLoop, calls=%fused_computation.1.clone, metadata={op_name="jit(compress_unit_forward)/jit(_pad)/pad" stack_frame_id=13}']
      %s171 = ssub.s32 %s15, 1
      %s172 = ssub.s32 1, %s25
      %s173 = smul.u32 256, %s172
      %p174 = scmp.lt.s32.totalorder %s24, 1
      %s175 = scalar_select %p174, %s24, 1
      %p176 = scmp.lt.s32.totalorder %s25, 0
      %s177 = scalar_select %p176, %s25, 0
      %s178 = smul.addr %s175, 4
      %s179 = sadd.s32 %s177, %s178
      %s180 = smul.addr %s179, 4
      %s181 = scalar_lea.vmem %s2, %s180
      %p182 = pneg %p55
      %p183 = pneg %p52
      %p184 = pneg %p76
      %p185 = pneg %p73
      %p186 = pneg %p97
      %p187 = pneg %p94
      %p188 = pneg %p125
      %p189 = pneg %p122
      %p190 = scmp.lt.s32.totalorder %s24, 1
      %s191 = scalar_select %p190, %s24, 1
      %p192 = scmp.lt.s32.totalorder %s25, 0
      %s193 = scalar_select %p192, %s25, 0
      %s194 = smul.addr %s191, 2
      %s195 = sadd.s32 %s193, %s194
      %s196 = smul.addr %s195, 8
      %s197 = scalar_lea.vmem %s4, %s196
      %s198 = ssub.s32 1, %s25
      %s199 = smul.u32 256, %s198
      %p200 = scmp.lt.s32.totalorder %s24, 1
      %s201 = scalar_select %p200, %s24, 1
      %p202 = scmp.lt.s32.totalorder %s25, 0
      %s203 = scalar_select %p202, %s25, 0
      %s204 = smul.addr %s201, 4
      %s205 = sadd.s32 %s203, %s204
      %s206 = smul.addr %s205, 4
      %s207 = scalar_lea.vmem %s2, %s206
      %s208 = ssub.s32 1, %s25
      %s209 = smul.u32 256, %s208
      %p210 = scmp.lt.s32.totalorder %s24, 1
      %s211 = scalar_select %p210, %s24, 1
      %p212 = scmp.lt.s32.totalorder %s25, 0
      %s213 = scalar_select %p212, %s25, 0
      %s214 = smul.addr %s211, 2
      %s215 = sadd.s32 %s213, %s214
      %s216 = smul.addr %s215, 8
      %s217 = scalar_lea.vmem %s4, %s216
      %s218 = ssub.s32 0, %s25
      %p219 = scmp.lt.s32.totalorder %s218, 0
      %s220 = scalar_select %p219, 0, 255
      %s221 = sshrl.u32 %s220, 1
      %s222 = sor.u32 %s220, %s221
      %s223 = sand.u32 %s222, 85
      %s224 = sshrl.u32 %s223, 1
      %s225 = sor.u32 %s223, %s224
      %s226 = sand.u32 51, %s225
      %s227 = sshrl.u32 %s226, 2
      %s228 = sor.u32 %s226, %s227
      %s229 = sand.u32 15, %s228
      %v230 = vld [vmem:[%s207] sm:%s229]
      %v231 = vunpack.c.l.bf16 %v230
      %v232 = vunpack.c.h.bf16 %v230
      %s233 = ssub.s32 0, %s25
      %v234 = vstv %s233
      %vm235 = vcmp.lt.s32.totalorder %v234, 0
      %v236 = vsel %vm235, %v10, %v231
      %s237 = smul.addr %s25, 128
      %v238 = vlaneseq
      %v239 = vand.u32 %v238, 127
      %v240 = vstv %s237
      %v241 = vadd.s32 %v239, %v240
      %vm242 = vcmp.lt.s32.totalorder %v241, 64
      %v243 = vsel %vm242, %v236, %v10
      %v244 = vpack.c.bf16 0.0, %v243
      %246 = vst [vmem:[#allocation7] sm:$0xf] %v244
      %s247 = scalar_lea.vmem %s207, 4
      %s248 = ssub.s32 0, %s25
      %p249 = scmp.lt.s32.totalorder %s248, 0
      %s250 = scalar_select %p249, 0, 255
      %s251 = sshrl.u32 %s250, 1
      %s252 = sor.u32 %s250, %s251
      %s253 = sand.u32 %s252, 85
      %s254 = sshrl.u32 %s253, 1
      %s255 = sor.u32 %s253, %s254
      %s256 = sand.u32 51, %s255
      %s257 = sshrl.u32 %s256, 2
      %s258 = sor.u32 %s256, %s257
      %s259 = sand.u32 15, %s258
      %v260 = vld [vmem:[%s247] sm:%s259]
      %v261 = vunpack.c.l.bf16 %v260
      %v262 = vunpack.c.h.bf16 %v260
      %s263 = ssub.s32 0, %s25
      %v264 = vstv %s263
      %vm265 = vcmp.lt.s32.totalorder %v264, 0
      %v266 = vsel %vm265, %v10, %v261
      %s267 = smul.addr %s25, 128
      %v268 = vlaneseq
      %v269 = vand.u32 %v268, 127
      %v270 = vstv %s267
      %v271 = vadd.s32 %v269, %v270
      %vm272 = vcmp.lt.s32.totalorder %v271, 64
      %v273 = vsel %vm272, %v266, %v10
      %s274 = scalar_lea.vmem [#allocation7], 4
      %v275 = vpack.c.bf16 0.0, %v273
      %277 = vst [vmem:[%s274] sm:$0xf] %v275
      %s278 = scalar_lea.vmem %s207, 8
      %s279 = ssub.s32 0, %s25
      %p280 = scmp.lt.s32.totalorder %s279, 0
      %s281 = scalar_select %p280, 0, 255
      %s282 = sshrl.u32 %s281, 1
      %s283 = sor.u32 %s281, %s282
      %s284 = sand.u32 %s283, 85
      %s285 = sshrl.u32 %s284, 1
      %s286 = sor.u32 %s284, %s285
      %s287 = sand.u32 51, %s286
      %s288 = sshrl.u32 %s287, 2
      %s289 = sor.u32 %s287, %s288
      %s290 = sand.u32 15, %s289
      %v291 = vld [vmem:[%s278] sm:%s290]
      %v292 = vunpack.c.l.bf16 %v291
      %v293 = vunpack.c.h.bf16 %v291
      %s294 = ssub.s32 0, %s25
      %v295 = vstv %s294
      %vm296 = vcmp.lt.s32.totalorder %v295, 0
      %v297 = vsel %vm296, %v10, %v292
      %s298 = smul.addr %s25, 128
      %v299 = vlaneseq
      %v300 = vand.u32 %v299, 127
      %v301 = vstv %s298
      %v302 = vadd.s32 %v300, %v301
      %vm303 = vcmp.lt.s32.totalorder %v302, 64
      %v304 = vsel %vm303, %v297, %v10
      %s305 = scalar_lea.vmem [#allocation7], 8
      %v306 = vpack.c.bf16 0.0, %v304
      %308 = vst [vmem:[%s305] sm:$0xf] %v306
      %s309 = scalar_lea.vmem %s207, 12
      %s310 = ssub.s32 0, %s25
      %p311 = scmp.lt.s32.totalorder %s310, 0
      %s312 = scalar_select %p311, 0, 255
      %s313 = sshrl.u32 %s312, 1
      %s314 = sor.u32 %s312, %s313
      %s315 = sand.u32 %s314, 85
      %s316 = sshrl.u32 %s315, 1
      %s317 = sor.u32 %s315, %s316
      %s318 = sand.u32 51, %s317
      %s319 = sshrl.u32 %s318, 2
      %s320 = sor.u32 %s318, %s319
      %s321 = sand.u32 15, %s320
      %v322 = vld [vmem:[%s309] sm:%s321]
      %v323 = vunpack.c.l.bf16 %v322
      %v324 = vunpack.c.h.bf16 %v322
      %s325 = ssub.s32 0, %s25
      %v326 = vstv %s325
      %vm327 = vcmp.lt.s32.totalorder %v326, 0
      %v328 = vsel %vm327, %v10, %v323
      %s329 = smul.addr %s25, 128
      %v330 = vlaneseq
      %v331 = vand.u32 %v330, 127
      %v332 = vstv %s329
      %v333 = vadd.s32 %v331, %v332
      %vm334 = vcmp.lt.s32.totalorder %v333, 64
      %v335 = vsel %vm334, %v328, %v10
      %s336 = scalar_lea.vmem [#allocation7], 12
      %v337 = vpack.c.bf16 0.0, %v335
      %339 = vst [vmem:[%s336] sm:$0xf] %v337
      %v341 = vld [vmem:[%s0] sm:$0xf]
      %v342 = vld [vmem:[%s0 + $0x4] sm:$0xf]
      %v343 = vld [vmem:[#allocation7] sm:$0xf]
      %v344 = vld [vmem:[#allocation7 + $0x4] sm:$0xf]
      %v345 = vld [vmem:[#allocation7 + $0x8] sm:$0xf]
      %v346 = vld [vmem:[#allocation7 + $0xc] sm:$0xf]
      %v347 = vld [vmem:[%s1] sm:$0xff]
      %v348 = vld [vmem:[%s1 + $0x8] sm:$0xff]
      %350 = vset.pattern.permute.xlu0 0
      %351 = vperm.xlu0 %350, %v347
      %v352 = vpop.permute.xlu0 %351
      %355 = vset.pattern.permute.xlu0 0
      %356 = vperm.xlu0 %355, %v348
      %v357 = vpop.permute.xlu0 %356
      %v361 = vunpack.c.l.b16 %v341
      %v362 = vunpack.c.l.b16 %v342
      %v363 = vpack.c.b16 %v362, %v361
      %v368 = vunpack.c.l.b16 %v343
      %v369 = vunpack.c.l.b16 %v344
      %v370 = vunpack.c.l.b16 %v345
      %v371 = vunpack.c.l.b16 %v346
      %v372 = vpack.c.b16 %v369, %v368
      %v373 = vpack.c.b16 %v371, %v370
      %vm376 = vcmask 261120
      %v378 = vsel %vm376, %v363, 0
      %380 = vmatprep.subr.bf16.mxu0 0
      %381 = vmatpush1.bf16.msra.mxu0 %v372
      %382 = vmatprep.subr.bf16.mxu0 0
      %383 = vmatpush1.bf16.msra.mxu0 %v373
      %384 = vmatprep.subr.bf16.mxu0 0
      %385 = vmatpush1.bf16.msra.mxu0 0
      %386 = vmatprep.subr.bf16.mxu0 0
      %387 = vmatpush1.bf16.msra.mxu0 0
      %388 = vmatprep.subr.bf16.mxu0 0
      %389 = vmatpush1.bf16.msra.mxu0 0
      %390 = vmatprep.subr.bf16.mxu0 0
      %391 = vmatpush1.bf16.msra.mxu0 0
      %392 = vmatprep.subr.bf16.mxu0 0
      %393 = vmatpush1.bf16.msra.mxu0 0
      %394 = vmatprep.subr.bf16.mxu0 0
      %395 = vmatpush1.bf16.msra.mxu0 0
      %396 = vmatprep.subr.bf16.mxu0 0
      %397 = vmatpush1.bf16.msra.mxu0 0
      %398 = vmatprep.subr.bf16.mxu0 0
      %399 = vmatpush1.bf16.msra.mxu0 0
      %400 = vmatprep.subr.bf16.mxu0 0
      %401 = vmatpush1.bf16.msra.mxu0 0
      %402 = vmatprep.subr.bf16.mxu0 0
      %403 = vmatpush1.bf16.msra.mxu0 0
      %404 = vmatprep.subr.bf16.mxu0 0
      %405 = vmatpush1.bf16.msra.mxu0 0
      %406 = vmatprep.subr.bf16.mxu0 0
      %407 = vmatpush1.bf16.msra.mxu0 0
      %408 = vmatprep.subr.bf16.mxu0 0
      %409 = vmatpush1.bf16.msra.mxu0 0
      %410 = vmatprep.subr.bf16.mxu0 0
      %411 = vmatpush1.bf16.msra.mxu0 0
      %412 = vmatprep.mubr.bf16.mxu0 0
      %413 = vmatmul.mubr.bf16.gmra.mrb[0].mxu0 %v378
      %v414 = vpop.f32.mrb[0].mxu0
      %v415 = vadd.f32 %v352, %v414
      %v416 = vpop.f32.mrb[0].mxu0
      %v417 = vpop.f32.mrb[0].mxu0
      %v418 = vadd.f32 %v357, %v417
      %v419 = vpop.f32.mrb[0].mxu0
      %420 = vdwg.mxu0
      %v421 = vmax.f32 %v415, 0.0
      %v422 = vmax.f32 %v418, 0.0
      %423 = vst [vmem:[%s217] sm:$0xff] %v421
      %424 = vst [vmem:[%s217 + $0x8] sm:$0xff] %v422
      %p425 = scmp.lt.s32.totalorder %s24, 1
      %s426 = scalar_select %p425, %s24, 1
      %p427 = scmp.lt.s32.totalorder %s25, 0
      %s428 = scalar_select %p427, %s25, 0
      %s429 = smul.addr %s426, 2
      %s430 = sadd.s32 %s428, %s429
      %s431 = smul.addr %s430, 8
      %s432 = scalar_lea.vmem %s4, %s431
      // Predicated region
      $region33: #{compress_unit_forward.2} parent=31 // pred_check
        %p433 = pneg %p122
      $region34: #{compress_unit_forward.2} parent=31 // pred_check_branch
        %435 = sbr.rel (%p433) target = $region36
      $region35: #{compress_unit_forward.2} parent=31 // pred_region
        _
      $region36: #{compress_unit_forward.2} parent=31 // pred_fallthru
        _
    $region32: #{compress_unit_forward.2} parent=5 // pred_fallthru
      _
    %p436 = scmp.le.s32.totalorder 2, %s15
    // Predicated region
    $region37: #{compress_unit_forward.2} parent=5 // pred_check
      %p437 = pneg %p436
    $region38: #{compress_unit_forward.2} parent=5 // pred_check_branch
      %439 = sbr.rel (%p437) target = $region40
    $region39: #{compress_unit_forward.2} parent=5 // pred_region
      %s440 = ssub.s32 %s15, 2
      // Predicated region
      $region41: #{compress_unit_forward.2} parent=39 // pred_check
        %p441 = pneg %p128
      $region42: #{compress_unit_forward.2} parent=39 // pred_check_branch
        %443 = sbr.rel (%p441) target = $region44
      $region43: #{compress_unit_forward.2} parent=39 // pred_region
        %p444 = scmp.lt.s32.totalorder %s26, 1
        %s445 = scalar_select %p444, %s26, 1
        %p446 = scmp.lt.s32.totalorder %s27, 0
        %s447 = scalar_select %p446, %s27, 0
        %s448 = smul.addr %s445, 2
        %s449 = sadd.s32 %s447, %s448
        %s450 = smul.addr %s449, 8
        %s451 = scalar_lea.vmem %s4, %s450
      $region44: #{compress_unit_forward.2} parent=39 // pred_fallthru
        _
    $region40: #{compress_unit_forward.2} parent=5 // pred_fallthru
      _
  $region6: #{compress_unit_forward.2} parent=0 // loop_footer
    %s19 = sadd.s32 1, %s15
  $region7: #{compress_unit_forward.2} parent=0 // loop_footer_branch
    %14 = sbr.rel target = $region3
  $region8: #{compress_unit_forward.2} parent=0 // loop_exit
    _

</llo_original>
